<compile_context>
chip_gen: v5e
topology: v5e:2x2
jax: 0.10.0
libtpu: 0.0.40
codegen_flags: <defaults>
</compile_context>

<pallas_src>
import functools

import jax
import jax.numpy as jnp
from jax.experimental import pallas as pl
from jax.experimental.pallas import tpu as pltpu

NUM_CLASSES = 21
ALPHA = 0.75
GAMMA = 2.0  # hard-coded as q*q inside the kernel


def _focal_loss_kernel(lp_ref, lt_ref, cls_ref, y_ref, out_ref, acc_ref):
    """Accumulates (smooth-L1, focal, num_pos) per-lane partials per core."""
    i = pl.program_id(1)
    n_i = pl.num_programs(1)

    @pl.when(i == 0)
    def _init():
        acc_ref[...] = jnp.zeros(acc_ref.shape, acc_ref.dtype)
        out_ref[...] = jnp.zeros(out_ref.shape, out_ref.dtype)

    y = y_ref[...]                                        # (1, T) int32
    posf = (y > 0).astype(jnp.float32)                    # positive anchors
    bgf = (y == 0).astype(jnp.float32)                    # background anchors
    # ignored anchors (y == -1, incl. lane padding) have posf = bgf = 0 and
    # therefore contribute nothing to any of the three sums.

    # ---- Smooth L1 over positive anchors (sublane reduce over 4 coords) ----
    d = lp_ref[...].astype(jnp.float32) - lt_ref[...].astype(jnp.float32)  # (4,T)
    ad = jnp.abs(d)
    sl1 = jnp.where(ad < 1.0, 0.5 * d * d, ad - 0.5)
    loc_row = jnp.sum(sl1, axis=0, keepdims=True) * posf  # (1, T)

    # ---- Focal loss, evaluated only at the target class --------------------
    x = cls_ref[...].astype(jnp.float32)                  # (C, T)
    m = jnp.max(x, axis=0, keepdims=True)                 # (1, T) sublane reduce
    z = x - m
    e = jnp.exp(z)                                        # single (C,T) exp (EUP)
    s = jnp.sum(e, axis=0, keepdims=True)                 # (1, T)
    lse = jnp.log(s)
    cls_idx = jax.lax.broadcasted_iota(jnp.int32, x.shape, 0)
    onehot = (cls_idx == jnp.maximum(y, 0)).astype(jnp.float32)
    picked_z = jnp.sum(onehot * z, axis=0, keepdims=True)  # z[y, lane]   (1, T)
    picked_logp = picked_z - lse                           # log_softmax at target
    pt = jnp.exp(picked_logp)                              # softmax prob at target
    q = 1.0 - pt
    w = ALPHA * posf + (1.0 - ALPHA) * bgf                 # 0 for ignored/padded
    cls_row = -(w * (q * q)) * picked_logp                 # (1, T)

    # Single masked read-modify-write on rows 0..2 (instead of three).
    acc_ref[0:3, :] += jnp.concatenate([loc_row, cls_row, posf], axis=0)

    @pl.when(i == n_i - 1)
    def _finish():
        loc_s = jnp.sum(acc_ref[0:1, :])
        cls_s = jnp.sum(acc_ref[1:2, :])
        pos_s = jnp.sum(acc_ref[2:3, :])
        r = jax.lax.broadcasted_iota(jnp.int32, (8, 128), 0)
        out_ref[...] = jnp.where(
            r == 0, loc_s, jnp.where(r == 1, cls_s, jnp.where(r == 2, pos_s, 0.0)))


@functools.partial(jax.jit, static_argnames=("tile", "feed_dtype"))
def _focal_loss_forward_impl(loc_preds, loc_targets, cls_preds, cls_targets, *,
                             tile, feed_dtype):
    B, A, _ = loc_preds.shape
    C = cls_preds.shape[-1]
    N = B * A

    if feed_dtype is not None:
        # Fold the downcast into the relayout; kernel computes in f32 anyway.
        loc_preds = loc_preds.astype(feed_dtype)
        loc_targets = loc_targets.astype(feed_dtype)
        cls_preds = cls_preds.astype(feed_dtype)

    # Lane-dense layout: anchors on lanes (see module TODO about doing this
    # upstream instead).
    lp = loc_preds.reshape(N, 4).T                        # (4, N)
    lt = loc_targets.reshape(N, 4).T                      # (4, N)
    cp = cls_preds.reshape(N, C).T                        # (C, N)
    ct = cls_targets.reshape(1, N).astype(jnp.int32)      # (1, N)

    # Pad lanes to a multiple of 2*tile (two cores x n_half tiles); padded
    # anchors get label -1 (ignored).
    n_half = max(1, -(-N // (2 * tile)))                  # ceil(N / (2*tile))
    padded = 2 * n_half * tile
    n_pad = padded - N
    lp = jnp.pad(lp, ((0, 0), (0, n_pad)))
    lt = jnp.pad(lt, ((0, 0), (0, n_pad)))
    cp = jnp.pad(cp, ((0, 0), (0, n_pad)))
    ct = jnp.pad(ct, ((0, 0), (0, n_pad)), constant_values=-1)

    lane_map = lambda c, i: (0, c * n_half + i)

    out = pl.pallas_call(
        _focal_loss_kernel,
        out_shape=jax.ShapeDtypeStruct((2, 8, 128), jnp.float32),
        grid=(2, n_half),
        in_specs=[
            pl.BlockSpec((4, tile), lane_map),            # loc_preds
            pl.BlockSpec((4, tile), lane_map),            # loc_targets
            pl.BlockSpec((C, tile), lane_map),            # cls_preds
            pl.BlockSpec((1, tile), lane_map),            # cls_targets
        ],
        # Each core writes only its own row -> disjoint output blocks.
        out_specs=pl.BlockSpec((None, 8, 128), lambda c, i: (c, 0, 0)),
        scratch_shapes=[pltpu.VMEM((8, tile), jnp.float32)],
        compiler_params=pltpu.CompilerParams(
            dimension_semantics=("parallel", "arbitrary"),
            vmem_limit_bytes=32 * 1024 * 1024),
    )(lp, lt, cp, ct)

    tot = jnp.sum(out, axis=0)                            # combine per-core rows
    loc_loss, cls_loss, num_pos = tot[0, 0], tot[1, 0], tot[2, 0]
    # NOTE: if there are no positive anchors, num_pos == 0 and this yields
    # inf/NaN exactly like the PyTorch module.
    return (loc_loss + cls_loss) / num_pos


def _round_up(x, m):
    return (x + m - 1) // m * m


def focal_loss_forward(loc_preds, loc_targets, cls_preds, cls_targets,
                       max_tile=8192, feed_dtype=None):
    """loss = (SmoothL1(loc) + FocalLoss(cls)) / num_pos, matching the torch module.

    max_tile: lane-tile size (multiple of 128). 8192 amortizes the ~0.35us
      per-step overhead on all generations and fits the v5e scoped-VMEM
      default; 16384 is fine on v6e/v7x with the 32 MiB vmem limit.
    feed_dtype: optionally jnp.bfloat16 to halve HBM traffic of loc/cls (the
      kernel upcasts to f32 internally); re-validate tolerances if used.
    """
    N = loc_preds.shape[0] * loc_preds.shape[1]
    tile = min(_round_up(max_tile, 128), _round_up(N, 128))
    return _focal_loss_forward_impl(
        loc_preds, loc_targets, cls_preds, cls_targets,
        tile=tile, feed_dtype=feed_dtype)


def _reference_forward(loc_preds, loc_targets, cls_preds, cls_targets):
    """Pure-JAX reference replicating the PyTorch semantics."""
    pos = cls_targets > 0
    num_pos = jnp.sum(pos.astype(jnp.float32))

    d = loc_preds - loc_targets
    ad = jnp.abs(d)
    sl1 = jnp.where(ad < 1.0, 0.5 * d * d, ad - 0.5)
    loc_loss = jnp.sum(jnp.where(pos[..., None], sl1, 0.0))

    logp = jax.nn.log_softmax(cls_preds, axis=-1)
    p = jnp.exp(logp)
    y = cls_targets
    w = ALPHA * (y > 0) + (1.0 - ALPHA) * (y == 0)
    wp = w[..., None] * (1.0 - p) ** GAMMA * logp
    picked = jnp.take_along_axis(wp, jnp.maximum(y, 0)[..., None], axis=-1)[..., 0]
    cls_loss = -jnp.sum(jnp.where(y > -1, picked, 0.0))
    return (loc_loss + cls_loss) / num_pos


if __name__ == "__main__":
    B, A = 2, 8  # batch_size=2, 8 anchors
    key = jax.random.PRNGKey(0)
    k1, k2, k3, k4 = jax.random.split(key, 4)

    loc_preds = jax.random.normal(k1, (B, A, 4), jnp.float32)
    loc_targets = jax.random.normal(k2, (B, A, 4), jnp.float32)
    cls_preds = jax.random.normal(k3, (B, A, NUM_CLASSES), jnp.float32)
    cls_targets = jax.random.randint(k4, (B, A), -1, NUM_CLASSES, jnp.int32)
    # guarantee at least one positive anchor so num_pos > 0
    cls_targets = cls_targets.at[0, 0].set(5)

    loss = focal_loss_forward(loc_preds, loc_targets, cls_preds, cls_targets)
    loss = jax.block_until_ready(loss)

    ref = _reference_forward(loc_preds, loc_targets, cls_preds, cls_targets)
    assert jnp.allclose(loss, ref, rtol=1e-4, atol=1e-5), (loss, ref)

    print("KERNEL_OK")
</pallas_src>

<mosaic_0001>
module attributes {stable_mosaic.version = 11 : i64} {
  func.func @_focal_loss_kernel(%arg0: i32, %arg1: i32, %arg2: memref<4x128xf32, #tpu.memory_space<vmem>>, %arg3: memref<4x128xf32, #tpu.memory_space<vmem>>, %arg4: memref<21x128xf32, #tpu.memory_space<vmem>>, %arg5: memref<1x128xi32, #tpu.memory_space<vmem>>, %arg6: memref<1x8x128xf32, #tpu.memory_space<vmem>>, %arg7: memref<8x128xf32, #tpu.memory_space<vmem>>) attributes {dimension_semantics = [#tpu.dimension_semantics<parallel>, #tpu.dimension_semantics<arbitrary>], iteration_bounds = array<i64: 2, 1>, scalar_prefetch = 0 : i64, scratch_operands = 1 : i64, tpu.core_type = #tpu.core_type<tc>, window_params = [{transform_indices = @transform_0, window_bounds = array<i64: 4, 128>}, {transform_indices = @transform_1, window_bounds = array<i64: 4, 128>}, {transform_indices = @transform_2, window_bounds = array<i64: 21, 128>}, {transform_indices = @transform_3, window_bounds = array<i64: 1, 128>}, {transform_indices = @transform_4, window_bounds = array<i64: 1, 8, 128>}]} {
    %c0_i32 = arith.constant 0 : i32
    %0 = arith.cmpi eq, %arg1, %c0_i32 : i32
    %1 = arith.extui %0 : i1 to i32
    %c0_i32_0 = arith.constant 0 : i32
    %2 = arith.cmpi ne, %1, %c0_i32_0 : i32
    scf.if %2 {
      %cst_27 = arith.constant 0.000000e+00 : f32
      %67 = vector.broadcast %cst_27 : f32 to vector<8x128xf32>
      %c0_28 = arith.constant 0 : index
      %c0_29 = arith.constant 0 : index
      %68 = vector.load %arg7[%c0_28, %c0_29] : memref<8x128xf32, #tpu.memory_space<vmem>>, vector<8x128xf32>
      tpu.vector_store %arg7[%c0_28, %c0_29], %67 {strides = array<i32>} : memref<8x128xf32, #tpu.memory_space<vmem>>, vector<8x128xf32>,
      %cst_30 = arith.constant 0.000000e+00 : f32
      %69 = vector.broadcast %cst_30 : f32 to vector<8x128xf32>
      %c0_31 = arith.constant 0 : index
      %c0_32 = arith.constant 0 : index
      %c0_33 = arith.constant 0 : index
      %70 = vector.load %arg6[%c0_31, %c0_32, %c0_33] : memref<1x8x128xf32, #tpu.memory_space<vmem>>, vector<1x8x128xf32>
      %71 = vector.shape_cast %70 : vector<1x8x128xf32> to vector<8x128xf32>
      %72 = vector.shape_cast %69 : vector<8x128xf32> to vector<1x8x128xf32>
      tpu.vector_store %arg6[%c0_31, %c0_32, %c0_33], %72 {strides = array<i32>} : memref<1x8x128xf32, #tpu.memory_space<vmem>>, vector<1x8x128xf32>,
    } else {
    }
    %c0 = arith.constant 0 : index
    %c0_1 = arith.constant 0 : index
    %3 = vector.load %arg5[%c0, %c0_1] : memref<1x128xi32, #tpu.memory_space<vmem>>, vector<1x128xi32>
    %c0_i32_2 = arith.constant 0 : i32
    %4 = vector.broadcast %c0_i32_2 : i32 to vector<1x128xi32>
    %5 = arith.cmpi sgt, %3, %4 : vector<1x128xi32>
    %6 = arith.extui %5 : vector<1x128xi1> to vector<1x128xi32>
    %7 = arith.sitofp %6 : vector<1x128xi32> to vector<1x128xf32>
    %c0_i32_3 = arith.constant 0 : i32
    %8 = vector.broadcast %c0_i32_3 : i32 to vector<1x128xi32>
    %9 = arith.cmpi eq, %3, %8 : vector<1x128xi32>
    %10 = arith.extui %9 : vector<1x128xi1> to vector<1x128xi32>
    %11 = arith.sitofp %10 : vector<1x128xi32> to vector<1x128xf32>
    %c0_4 = arith.constant 0 : index
    %c0_5 = arith.constant 0 : index
    %12 = vector.load %arg2[%c0_4, %c0_5] : memref<4x128xf32, #tpu.memory_space<vmem>>, vector<4x128xf32>
    %c0_6 = arith.constant 0 : index
    %c0_7 = arith.constant 0 : index
    %13 = vector.load %arg3[%c0_6, %c0_7] : memref<4x128xf32, #tpu.memory_space<vmem>>, vector<4x128xf32>
    %14 = arith.subf %12, %13 : vector<4x128xf32>
    %15 = math.absf %14 : vector<4x128xf32>
    %cst = arith.constant 1.000000e+00 : f32
    %16 = vector.broadcast %cst : f32 to vector<4x128xf32>
    %17 = arith.cmpf olt, %15, %16 : vector<4x128xf32>
    %cst_8 = arith.constant 5.000000e-01 : f32
    %18 = vector.broadcast %cst_8 : f32 to vector<4x128xf32>
    %19 = arith.mulf %18, %14 : vector<4x128xf32>
    %20 = arith.mulf %19, %14 : vector<4x128xf32>
    %cst_9 = arith.constant 5.000000e-01 : f32
    %21 = vector.broadcast %cst_9 : f32 to vector<4x128xf32>
    %22 = arith.subf %15, %21 : vector<4x128xf32>
    %23 = arith.select %17, %20, %22 : vector<4x128xi1>, vector<4x128xf32>
    %cst_10 = arith.constant dense<0.000000e+00> : vector<128xf32>
    %24 = vector.multi_reduction <add>, %23, %cst_10 [0] : vector<4x128xf32> to vector<128xf32>
    %25 = vector.shape_cast %24 : vector<128xf32> to vector<1x128xf32>
    %26 = arith.mulf %25, %7 : vector<1x128xf32>
    %c0_11 = arith.constant 0 : index
    %c0_12 = arith.constant 0 : index
    %27 = vector.load %arg4[%c0_11, %c0_12] : memref<21x128xf32, #tpu.memory_space<vmem>>, vector<21x128xf32>
    %cst_13 = arith.constant dense<0xFF800000> : vector<128xf32>
    %28 = vector.multi_reduction <maximumf>, %27, %cst_13 [0] : vector<21x128xf32> to vector<128xf32>
    %29 = vector.shape_cast %28 : vector<128xf32> to vector<1x128xf32>
    %30 = vector.broadcast %29 : vector<1x128xf32> to vector<21x128xf32>
    %31 = arith.subf %27, %30 : vector<21x128xf32>
    %32 = math.exp %31 : vector<21x128xf32>
    %cst_14 = arith.constant dense<0.000000e+00> : vector<128xf32>
    %33 = vector.multi_reduction <add>, %32, %cst_14 [0] : vector<21x128xf32> to vector<128xf32>
    %34 = vector.shape_cast %33 : vector<128xf32> to vector<1x128xf32>
    %35 = math.log %34 : vector<1x128xf32>
    %36 = tpu.iota {dimensions = array<i32: 0>} : vector<21x128xi32>
    %c0_i32_15 = arith.constant 0 : i32
    %37 = vector.broadcast %c0_i32_15 : i32 to vector<1x128xi32>
    %38 = arith.maxsi %3, %37 : vector<1x128xi32>
    %39 = vector.broadcast %38 : vector<1x128xi32> to vector<21x128xi32>
    %40 = arith.cmpi eq, %36, %39 : vector<21x128xi32>
    %41 = arith.extui %40 : vector<21x128xi1> to vector<21x128xi32>
    %42 = arith.sitofp %41 : vector<21x128xi32> to vector<21x128xf32>
    %43 = arith.mulf %42, %31 : vector<21x128xf32>
    %cst_16 = arith.constant dense<0.000000e+00> : vector<128xf32>
    %44 = vector.multi_reduction <add>, %43, %cst_16 [0] : vector<21x128xf32> to vector<128xf32>
    %45 = vector.shape_cast %44 : vector<128xf32> to vector<1x128xf32>
    %46 = arith.subf %45, %35 : vector<1x128xf32>
    %47 = math.exp %46 : vector<1x128xf32>
    %cst_17 = arith.constant 1.000000e+00 : f32
    %48 = vector.broadcast %cst_17 : f32 to vector<1x128xf32>
    %49 = arith.subf %48, %47 : vector<1x128xf32>
    %cst_18 = arith.constant 7.500000e-01 : f32
    %50 = vector.broadcast %cst_18 : f32 to vector<1x128xf32>
    %51 = arith.mulf %50, %7 : vector<1x128xf32>
    %cst_19 = arith.constant 2.500000e-01 : f32
    %52 = vector.broadcast %cst_19 : f32 to vector<1x128xf32>
    %53 = arith.mulf %52, %11 : vector<1x128xf32>
    %54 = arith.addf %51, %53 : vector<1x128xf32>
    %55 = arith.mulf %49, %49 : vector<1x128xf32>
    %56 = arith.mulf %54, %55 : vector<1x128xf32>
    %cst_20 = arith.constant 0.000000e+00 : f32
    %57 = vector.broadcast %cst_20 : f32 to vector<1x128xf32>
    %58 = arith.subf %57, %56 : vector<1x128xf32>
    %59 = arith.mulf %58, %46 : vector<1x128xf32>
    %c0_21 = arith.constant 0 : index
    %c0_22 = arith.constant 0 : index
    %60 = vector.load %arg7[%c0_21, %c0_22] : memref<8x128xf32, #tpu.memory_space<vmem>>, vector<3x128xf32>
    %61 = tpu.concatenate %26, %59, %7 in 0 : vector<1x128xf32>, vector<1x128xf32>, vector<1x128xf32> -> vector<3x128xf32>
    %62 = arith.addf %60, %61 : vector<3x128xf32>
    %c0_23 = arith.constant 0 : index
    %c0_24 = arith.constant 0 : index
    %63 = vector.load %arg7[%c0_23, %c0_24] : memref<8x128xf32, #tpu.memory_space<vmem>>, vector<3x128xf32>
    tpu.vector_store %arg7[%c0_23, %c0_24], %62 {strides = array<i32>} : memref<8x128xf32, #tpu.memory_space<vmem>>, vector<3x128xf32>,
    %c0_i32_25 = arith.constant 0 : i32
    %64 = arith.cmpi eq, %arg1, %c0_i32_25 : i32
    %65 = arith.extui %64 : i1 to i32
    %c0_i32_26 = arith.constant 0 : i32
    %66 = arith.cmpi ne, %65, %c0_i32_26 : i32
    scf.if %66 {
      %c0_27 = arith.constant 0 : index
      %c0_28 = arith.constant 0 : index
      %67 = vector.load %arg7[%c0_27, %c0_28] : memref<8x128xf32, #tpu.memory_space<vmem>>, vector<1x128xf32>
      %68 = vector.shape_cast %67 : vector<1x128xf32> to vector<1x1x128xf32>
      %cst_29 = arith.constant dense<0.000000e+00> : vector<1xf32>
      %69 = vector.multi_reduction <add>, %68, %cst_29 [1, 2] : vector<1x1x128xf32> to vector<1xf32>
      %70 = vector.shape_cast %69 : vector<1xf32> to vector<1x1x1xf32>
      %71 = vector.extract %70[0, 0, 0] : f32 from vector<1x1x1xf32>
      %c1 = arith.constant 1 : index
      %c0_30 = arith.constant 0 : index
      %72 = vector.load %arg7[%c1, %c0_30] : memref<8x128xf32, #tpu.memory_space<vmem>>, vector<1x128xf32>
      %73 = vector.shape_cast %72 : vector<1x128xf32> to vector<1x1x128xf32>
      %cst_31 = arith.constant dense<0.000000e+00> : vector<1xf32>
      %74 = vector.multi_reduction <add>, %73, %cst_31 [1, 2] : vector<1x1x128xf32> to vector<1xf32>
      %75 = vector.shape_cast %74 : vector<1xf32> to vector<1x1x1xf32>
      %76 = vector.extract %75[0, 0, 0] : f32 from vector<1x1x1xf32>
      %c2 = arith.constant 2 : index
      %c0_32 = arith.constant 0 : index
      %77 = vector.load %arg7[%c2, %c0_32] : memref<8x128xf32, #tpu.memory_space<vmem>>, vector<1x128xf32>
      %78 = vector.shape_cast %77 : vector<1x128xf32> to vector<1x1x128xf32>
      %cst_33 = arith.constant dense<0.000000e+00> : vector<1xf32>
      %79 = vector.multi_reduction <add>, %78, %cst_33 [1, 2] : vector<1x1x128xf32> to vector<1xf32>
      %80 = vector.shape_cast %79 : vector<1xf32> to vector<1x1x1xf32>
      %81 = vector.extract %80[0, 0, 0] : f32 from vector<1x1x1xf32>
      %82 = tpu.iota {dimensions = array<i32: 0>} : vector<8x128xi32>
      %c0_i32_34 = arith.constant 0 : i32
      %83 = vector.broadcast %c0_i32_34 : i32 to vector<8x128xi32>
      %84 = arith.cmpi eq, %82, %83 : vector<8x128xi32>
      %c1_i32 = arith.constant 1 : i32
      %85 = vector.broadcast %c1_i32 : i32 to vector<8x128xi32>
      %86 = arith.cmpi eq, %82, %85 : vector<8x128xi32>
      %c2_i32 = arith.constant 2 : i32
      %87 = vector.broadcast %c2_i32 : i32 to vector<8x128xi32>
      %88 = arith.cmpi eq, %82, %87 : vector<8x128xi32>
      %cst_35 = arith.constant 0.000000e+00 : f32
      %89 = vector.broadcast %81 : f32 to vector<8x128xf32>
      %90 = vector.broadcast %cst_35 : f32 to vector<8x128xf32>
      %91 = arith.select %88, %89, %90 : vector<8x128xi1>, vector<8x128xf32>
      %92 = vector.broadcast %76 : f32 to vector<8x128xf32>
      %93 = arith.select %86, %92, %91 : vector<8x128xi1>, vector<8x128xf32>
      %94 = vector.broadcast %71 : f32 to vector<8x128xf32>
      %95 = arith.select %84, %94, %93 : vector<8x128xi1>, vector<8x128xf32>
      %c0_36 = arith.constant 0 : index
      %c0_37 = arith.constant 0 : index
      %c0_38 = arith.constant 0 : index
      %96 = vector.load %arg6[%c0_36, %c0_37, %c0_38] : memref<1x8x128xf32, #tpu.memory_space<vmem>>, vector<1x8x128xf32>
      %97 = vector.shape_cast %96 : vector<1x8x128xf32> to vector<8x128xf32>
      %98 = vector.shape_cast %95 : vector<8x128xf32> to vector<1x8x128xf32>
      tpu.vector_store %arg6[%c0_36, %c0_37, %c0_38], %98 {strides = array<i32>} : memref<1x8x128xf32, #tpu.memory_space<vmem>>, vector<1x8x128xf32>,
    } else {
    }
    return
  }
  func.func @transform_0(%arg0: i32, %arg1: i32) -> (i32, i32) {
    %c1_i32 = arith.constant 1 : i32
    %0 = arith.muli %arg0, %c1_i32 : i32
    %1 = arith.addi %0, %arg1 : i32
    %c0_i32 = arith.constant 0 : i32
    %c0_i32_0 = arith.constant 0 : i32
    return %c0_i32, %1 : i32, i32
  }
  func.func @transform_1(%arg0: i32, %arg1: i32) -> (i32, i32) {
    %c1_i32 = arith.constant 1 : i32
    %0 = arith.muli %arg0, %c1_i32 : i32
    %1 = arith.addi %0, %arg1 : i32
    %c0_i32 = arith.constant 0 : i32
    %c0_i32_0 = arith.constant 0 : i32
    return %c0_i32, %1 : i32, i32
  }
  func.func @transform_2(%arg0: i32, %arg1: i32) -> (i32, i32) {
    %c1_i32 = arith.constant 1 : i32
    %0 = arith.muli %arg0, %c1_i32 : i32
    %1 = arith.addi %0, %arg1 : i32
    %c0_i32 = arith.constant 0 : i32
    %c0_i32_0 = arith.constant 0 : i32
    return %c0_i32, %1 : i32, i32
  }
  func.func @transform_3(%arg0: i32, %arg1: i32) -> (i32, i32) {
    %c1_i32 = arith.constant 1 : i32
    %0 = arith.muli %arg0, %c1_i32 : i32
    %1 = arith.addi %0, %arg1 : i32
    %c0_i32 = arith.constant 0 : i32
    %c0_i32_0 = arith.constant 0 : i32
    return %c0_i32, %1 : i32, i32
  }
  func.func @transform_4(%arg0: i32, %arg1: i32) -> (i32, i32, i32) {
    %c0_i32 = arith.constant 0 : i32
    %c0_i32_0 = arith.constant 0 : i32
    %c0_i32_1 = arith.constant 0 : i32
    return %arg0, %c0_i32, %c0_i32_0 : i32, i32, i32
  }
}

</mosaic_0001>

<llo_original>
// kernel: _focal_loss_forward_impl.1
$region0: #{_focal_loss_forward_impl.1}
  #allocation0 [shape = 'u32[]', space=smem, size = 0x4, offset = 0x4, fixed_abs, tag = 'smem constant byte address 0x4 - core index']
  #allocation1 [shape = 'u32[72,128]{1,0:T(1,128)}', space=vmem, size = 0x9000, scoped, tag = 'internal scratch']
  #allocation2 [shape = 'f32[8,128]{1,0:T(8,128)}', space=vmem, size = 0x1000, scoped, tag = 'scratch operand']
  %s0 = inlined_call_operand.vmem [shape: f32[4,256], index: 0, kind: input, shape index: {}]
  %s1 = inlined_call_operand.vmem [shape: f32[4,256], index: 1, kind: input, shape index: {}]
  %s2 = inlined_call_operand.vmem [shape: f32[21,256], index: 2, kind: input, shape index: {}]
  %s3 = inlined_call_operand.vmem [shape: s32[1,256], index: 3, kind: input, shape index: {}]
  %s4 = inlined_call_operand.vmem [shape: f32[2,8,128], index: 4, kind: output, shape index: {}]
  %s5 = sld [smem:[#allocation0]]
  $region95: #{_focal_loss_forward_impl.1} parent=0
    _
  %s7 = ssub.s32 1, %s5
  %s8 = scalar_select 0, %s7, %s5
  $region1: #{_focal_loss_forward_impl.1} parent=0
    #allocation3 [shape = 'u8[24576]{0}', space=vmem, size = 0x6000, scoped, tag = 'input window, operand 2']
    loop: start=0, step=1, limit=4
    $region2: #{_focal_loss_forward_impl.1} parent=1 // loop_pre_header
      _
    $region3: #{_focal_loss_forward_impl.1} parent=1 // loop_header
      %s10 = sphi 0, %s14
      %p11 = scmp.ge.s32.totalorder %s10, 4
      %s17 = sphi 0, %s29
      %s18 = sphi 0, %s25
      %s19 = sphi 0, %s17
      %s20 = sphi 0, %s18
      %s21 = sphi 0, %s19
      %s22 = sphi 0, %s20
      %s34 = sphi 0, %s36
      %s37 = sphi 0, %s34
      %s38 = sphi 0, %s37
      %s54 = sphi 0, %s38
      %s62 = sphi 0, %s64
      %s65 = sphi 0, %s62
      %s66 = sphi 0, %s65
      %s82 = sphi 0, %s66
      %s90 = sphi 0, %s92
      %s93 = sphi 0, %s90
      %s94 = sphi 0, %s93
      %s110 = sphi 0, %s94
      %s118 = sphi 0, %s120
      %s121 = sphi 0, %s118
      %s122 = sphi 0, %s121
      %s138 = sphi 0, %s122
      %s144 = sphi 0, %s146
      %s147 = sphi 0, %s144
      %s148 = sphi 0, %s147
      %s164 = sphi 0, %s148
    $region4: #{_focal_loss_forward_impl.1} parent=1 // loop_header_branch
      %13 = sbr.rel (%p11) target = $region8
    $region5: #{_focal_loss_forward_impl.1} parent=1 // loop_body
      %s15 = ssub.s32 %s10, 1
      %s16 = ssub.s32 %s10, 2
      %s23 = sadd.s32 1, %s18
      %p24 = scmp.ge.s32.totalorder %s23, 1
      %s25 = scalar_select %p24, 0, %s23
      %s26 = sadd.s32 1, %s17
      %s27 = scalar_select %p24, %s26, %s17
      %p28 = scmp.ge.s32.totalorder %s27, 2
      %s29 = scalar_select %p28, 0, %s27
      %s30 = sadd.s32 %s17, %s18
      %s31 = sadd.s32 %s29, %s25
      %s32 = ssub.s32 %s30, %s31
      %p33 = scmp.eq.s32.totalorder %s32, 0
      %s35 = sadd.s32 %s34, 1
      %s36 = scalar_select %p33, %s34, %s35
      %p39 = pneg %p33
      %p40 = scmp.eq.s32.totalorder %s10, 1
      %p41 = por %p39, %p40
      %p42 = scmp.ne.s32.totalorder %s34, %s37
      %p43 = scmp.eq.s32.totalorder %s10, 0
      %p44 = por %p42, %p43
      %p45 = scmp.ne.s32.totalorder %s34, %s37
      %p46 = scmp.eq.s32.totalorder %s15, 1
      %p47 = por %p45, %p46
      %p48 = scmp.ne.s32.totalorder %s37, %s38
      %p49 = scmp.eq.s32.totalorder %s15, 0
      %p50 = por %p48, %p49
      %p51 = scmp.ne.s32.totalorder %s37, %s38
      %p52 = scmp.eq.s32.totalorder %s16, 1
      %p53 = por %p51, %p52
      %p55 = scmp.ne.s32.totalorder %s38, %s54
      %p56 = scmp.eq.s32.totalorder %s16, 0
      %p57 = por %p55, %p56
      %s58 = sadd.s32 %s17, %s18
      %s59 = sadd.s32 %s29, %s25
      %s60 = ssub.s32 %s58, %s59
      %p61 = scmp.eq.s32.totalorder %s60, 0
      %s63 = sadd.s32 %s62, 1
      %s64 = scalar_select %p61, %s62, %s63
      %p67 = pneg %p61
      %p68 = scmp.eq.s32.totalorder %s10, 1
      %p69 = por %p67, %p68
      %p70 = scmp.ne.s32.totalorder %s62, %s65
      %p71 = scmp.eq.s32.totalorder %s10, 0
      %p72 = por %p70, %p71
      %p73 = scmp.ne.s32.totalorder %s62, %s65
      %p74 = scmp.eq.s32.totalorder %s15, 1
      %p75 = por %p73, %p74
      %p76 = scmp.ne.s32.totalorder %s65, %s66
      %p77 = scmp.eq.s32.totalorder %s15, 0
      %p78 = por %p76, %p77
      %p79 = scmp.ne.s32.totalorder %s65, %s66
      %p80 = scmp.eq.s32.totalorder %s16, 1
      %p81 = por %p79, %p80
      %p83 = scmp.ne.s32.totalorder %s66, %s82
      %p84 = scmp.eq.s32.totalorder %s16, 0
      %p85 = por %p83, %p84
      %s86 = sadd.s32 %s17, %s18
      %s87 = sadd.s32 %s29, %s25
      %s88 = ssub.s32 %s86, %s87
      %p89 = scmp.eq.s32.totalorder %s88, 0
      %s91 = sadd.s32 %s90, 1
      %s92 = scalar_select %p89, %s90, %s91
      %p95 = pneg %p89
      %p96 = scmp.eq.s32.totalorder %s10, 1
      %p97 = por %p95, %p96
      %p98 = scmp.ne.s32.totalorder %s90, %s93
      %p99 = scmp.eq.s32.totalorder %s10, 0
      %p100 = por %p98, %p99
      %p101 = scmp.ne.s32.totalorder %s90, %s93
      %p102 = scmp.eq.s32.totalorder %s15, 1
      %p103 = por %p101, %p102
      %p104 = scmp.ne.s32.totalorder %s93, %s94
      %p105 = scmp.eq.s32.totalorder %s15, 0
      %p106 = por %p104, %p105
      %p107 = scmp.ne.s32.totalorder %s93, %s94
      %p108 = scmp.eq.s32.totalorder %s16, 1
      %p109 = por %p107, %p108
      %p111 = scmp.ne.s32.totalorder %s94, %s110
      %p112 = scmp.eq.s32.totalorder %s16, 0
      %p113 = por %p111, %p112
      %s114 = sadd.s32 %s17, %s18
      %s115 = sadd.s32 %s29, %s25
      %s116 = ssub.s32 %s114, %s115
      %p117 = scmp.eq.s32.totalorder %s116, 0
      %s119 = sadd.s32 %s118, 1
      %s120 = scalar_select %p117, %s118, %s119
      %p123 = pneg %p117
      %p124 = scmp.eq.s32.totalorder %s10, 1
      %p125 = por %p123, %p124
      %p126 = scmp.ne.s32.totalorder %s118, %s121
      %p127 = scmp.eq.s32.totalorder %s10, 0
      %p128 = por %p126, %p127
      %p129 = scmp.ne.s32.totalorder %s118, %s121
      %p130 = scmp.eq.s32.totalorder %s15, 1
      %p131 = por %p129, %p130
      %p132 = scmp.ne.s32.totalorder %s121, %s122
      %p133 = scmp.eq.s32.totalorder %s15, 0
      %p134 = por %p132, %p133
      %p135 = scmp.ne.s32.totalorder %s121, %s122
      %p136 = scmp.eq.s32.totalorder %s16, 1
      %p137 = por %p135, %p136
      %p139 = scmp.ne.s32.totalorder %s122, %s138
      %p140 = scmp.eq.s32.totalorder %s16, 0
      %p141 = por %p139, %p140
      %s142 = ssub.s32 %s17, %s29
      %p143 = scmp.eq.s32.totalorder %s142, 0
      %s145 = sadd.s32 %s144, 1
      %s146 = scalar_select %p143, %s144, %s145
      %p149 = pneg %p143
      %p150 = scmp.eq.s32.totalorder %s10, 1
      %p151 = por %p149, %p150
      %p152 = scmp.ne.s32.totalorder %s144, %s147
      %p153 = scmp.eq.s32.totalorder %s10, 0
      %p154 = por %p152, %p153
      %p155 = scmp.ne.s32.totalorder %s144, %s147
      %p156 = scmp.eq.s32.totalorder %s15, 1
      %p157 = por %p155, %p156
      %p158 = scmp.ne.s32.totalorder %s147, %s148
      %p159 = scmp.eq.s32.totalorder %s15, 0
      %p160 = por %p158, %p159
      %p161 = scmp.ne.s32.totalorder %s147, %s148
      %p162 = scmp.eq.s32.totalorder %s16, 1
      %p163 = por %p161, %p162
      %p165 = scmp.ne.s32.totalorder %s148, %s164
      %p166 = scmp.eq.s32.totalorder %s16, 0
      %p167 = por %p165, %p166
      %p168 = scmp.le.s32.totalorder 1, %s10
      %p169 = scmp.lt.s32.totalorder %s10, 3
      %p170 = pnand %p168, %p169
      %p171 = pneg %p170
      // Predicated region
      $region9: #{_focal_loss_forward_impl.1} parent=5 // pred_check
        _
      $region10: #{_focal_loss_forward_impl.1} parent=5 // pred_check_branch
        %173 = sbr.rel (%p170) target = $region12
      $region11: #{_focal_loss_forward_impl.1} parent=5 // pred_region
        %s174 = ssub.s32 %s10, 1
      $region12: #{_focal_loss_forward_impl.1} parent=5 // pred_fallthru
        _
      %p175 = scmp.lt.s32.totalorder %s10, 2
      // Predicated region
      $region13: #{_focal_loss_forward_impl.1} parent=5 // pred_check
        %p176 = pneg %p175
      $region14: #{_focal_loss_forward_impl.1} parent=5 // pred_check_branch
        %178 = sbr.rel (%p176) target = $region16
      $region15: #{_focal_loss_forward_impl.1} parent=5 // pred_region
        // Predicated region
        $region17: #{_focal_loss_forward_impl.1} parent=15 // pred_check
          %p179 = pneg %p44
        $region18: #{_focal_loss_forward_impl.1} parent=15 // pred_check_branch
          %181 = sbr.rel (%p179) target = $region20
        $region19: #{_focal_loss_forward_impl.1} parent=15 // pred_region
          %s182 = sadd.s32 %s17, %s18
          %p183 = scmp.lt.s32.totalorder %s182, 1
          %s184 = scalar_select %p183, %s182, 1
          %s185 = smul.addr %s184, 4
          %s186 = scalar_lea.vmem %s0, %s185
          %s187 = sadd.s32 %s17, %s18
        $region20: #{_focal_loss_forward_impl.1} parent=15 // pred_fallthru
          _
        // Predicated region
        $region21: #{_focal_loss_forward_impl.1} parent=15 // pred_check
          %p188 = pneg %p72
        $region22: #{_focal_loss_forward_impl.1} parent=15 // pred_check_branch
          %190 = sbr.rel (%p188) target = $region24
        $region23: #{_focal_loss_forward_impl.1} parent=15 // pred_region
          %s191 = sadd.s32 %s17, %s18
          %p192 = scmp.lt.s32.totalorder %s191, 1
          %s193 = scalar_select %p192, %s191, 1
          %s194 = smul.addr %s193, 4
          %s195 = scalar_lea.vmem %s1, %s194
          %s196 = sadd.s32 %s17, %s18
        $region24: #{_focal_loss_forward_impl.1} parent=15 // pred_fallthru
          _
        // Predicated region
        $region25: #{_focal_loss_forward_impl.1} parent=15 // pred_check
          %p197 = pneg %p100
        $region26: #{_focal_loss_forward_impl.1} parent=15 // pred_check_branch
          %199 = sbr.rel (%p197) target = $region28
        $region27: #{_focal_loss_forward_impl.1} parent=15 // pred_region
          %s200 = sand.u32 %s90, 1
          %s201 = sand.u32 %s90, 1
          %s202 = smul.addr %s201, 24
          %s203 = scalar_lea.vmem [#allocation3], %s202
          %s204 = sadd.s32 %s17, %s18
          %s205 = smul.addr %s204, 8
          %s206 = scalar_lea.vmem %s2, %s205
          // Predicated region
          $region29: #{_focal_loss_forward_impl.1} parent=27 // pred_check
            _
          $region30: #{_focal_loss_forward_impl.1} parent=27 // pred_check_branch
            %208 = sbr.rel (0) target = $region32
          $region31: #{_focal_loss_forward_impl.1} parent=27 // pred_region
            // Predicated region
            $region33: #{_focal_loss_forward_impl.1} parent=31 // pred_check
              _
            $region34: #{_focal_loss_forward_impl.1} parent=31 // pred_check_branch
              %210 = sbr.rel (0) target = $region36
            $region35: #{_focal_loss_forward_impl.1} parent=31 // pred_region
              // Predicated region
              $region48: #{_focal_loss_forward_impl.1} parent=35 // pred_check
                _
              $region49: #{_focal_loss_forward_impl.1} parent=35 // pred_check_branch
                %230 = sbr.rel (0) target = $region51
              $region50: #{_focal_loss_forward_impl.1} parent=35 // pred_region
                loop: start=0, step=1, limit=1
                $region52: #{_focal_loss_forward_impl.1} parent=50 // loop_pre_header
                  _
                $region53: #{_focal_loss_forward_impl.1} parent=50 // loop_header
                  %s232 = sphi 0, %s236
                  %p233 = scmp.ge.s32.totalorder %s232, 1
                  %s237 = sphi %s206, %s206
                  %s238 = sphi %s203, %s203
                $region54: #{_focal_loss_forward_impl.1} parent=50 // loop_header_branch
                  %235 = sbr.rel (%p233) target = $region58
                $region55: #{_focal_loss_forward_impl.1} parent=50 // loop_body
                  %v239 = vld [vmem:[%s237] sm:$0xff]
                  %240 = vst [vmem:[%s238] sm:$0xff] %v239
                  %v241 = vld [vmem:[%s237 + $0x10] sm:$0xff]
                  %242 = vst [vmem:[%s238 + $0x8] sm:$0xff] %v241
                  %v243 = vld [vmem:[%s237 + $0x20] sm:$0xff]
                  %244 = vst [vmem:[%s238 + $0x10] sm:$0xff] %v243
                $region56: #{_focal_loss_forward_impl.1} parent=50 // loop_footer
                  %s236 = sadd.s32 1, %s232
                $region57: #{_focal_loss_forward_impl.1} parent=50 // loop_footer_branch
                  %231 = sbr.rel target = $region53
                $region58: #{_focal_loss_forward_impl.1} parent=50 // loop_exit
                  _
              $region51: #{_focal_loss_forward_impl.1} parent=35 // pred_fallthru
                _
              // Predicated region
              $region59: #{_focal_loss_forward_impl.1} parent=35 // pred_check
                _
              $region60: #{_focal_loss_forward_impl.1} parent=35 // pred_check_branch
                %246 = sbr.rel target = $region62
              $region61: #{_focal_loss_forward_impl.1} parent=35 // pred_region
                _
              $region62: #{_focal_loss_forward_impl.1} parent=35 // pred_fallthru
                _
            $region36: #{_focal_loss_forward_impl.1} parent=31 // pred_fallthru
              _
            // Predicated region
            $region37: #{_focal_loss_forward_impl.1} parent=31 // pred_check
              _
            $region38: #{_focal_loss_forward_impl.1} parent=31 // pred_check_branch
              %212 = sbr.rel target = $region40
            $region39: #{_focal_loss_forward_impl.1} parent=31 // pred_region
              %s214 = ssub.s32 256, 1
              loop: start=0, step=1, limit=1
              $region41: #{_focal_loss_forward_impl.1} parent=39 // loop_pre_header
                _
              $region42: #{_focal_loss_forward_impl.1} parent=39 // loop_header
                %s216 = sphi 0, %s220
                %p217 = scmp.ge.s32.totalorder %s216, 1
                %s221 = sphi %s206, %s206
                %s222 = sphi %s203, %s203
              $region43: #{_focal_loss_forward_impl.1} parent=39 // loop_header_branch
                %219 = sbr.rel (%p217) target = $region47
              $region44: #{_focal_loss_forward_impl.1} parent=39 // loop_body
                %v223 = vld [vmem:[%s221] sm:%s214]
                %224 = vst [vmem:[%s222] sm:%s214] %v223
                %v225 = vld [vmem:[%s221 + $0x10] sm:%s214]
                %226 = vst [vmem:[%s222 + $0x8] sm:%s214] %v225
                %v227 = vld [vmem:[%s221 + $0x20] sm:%s214]
                %228 = vst [vmem:[%s222 + $0x10] sm:%s214] %v227
              $region45: #{_focal_loss_forward_impl.1} parent=39 // loop_footer
                %s220 = sadd.s32 1, %s216
              $region46: #{_focal_loss_forward_impl.1} parent=39 // loop_footer_branch
                %215 = sbr.rel target = $region42
              $region47: #{_focal_loss_forward_impl.1} parent=39 // loop_exit
                _
            $region40: #{_focal_loss_forward_impl.1} parent=31 // pred_fallthru
              _
          $region32: #{_focal_loss_forward_impl.1} parent=27 // pred_fallthru
            _
          %247 = vnop
        $region28: #{_focal_loss_forward_impl.1} parent=15 // pred_fallthru
          _
        // Predicated region
        $region63: #{_focal_loss_forward_impl.1} parent=15 // pred_check
          %p248 = pneg %p128
        $region64: #{_focal_loss_forward_impl.1} parent=15 // pred_check_branch
          %250 = sbr.rel (%p248) target = $region66
        $region65: #{_focal_loss_forward_impl.1} parent=15 // pred_region
          %s251 = sadd.s32 %s17, %s18
          %p252 = scmp.lt.s32.totalorder %s251, 1
          %s253 = scalar_select %p252, %s251, 1
          %s254 = scalar_lea.vmem %s3, %s253
          %s255 = sadd.s32 %s17, %s18
        $region66: #{_focal_loss_forward_impl.1} parent=15 // pred_fallthru
          _
      $region16: #{_focal_loss_forward_impl.1} parent=5 // pred_fallthru
        _
      %p256 = scmp.le.s32.totalorder 1, %s10
      %p257 = scmp.lt.s32.totalorder %s10, 3
      %p258 = pnand %p256, %p257
      %p259 = pneg %p258
      // Predicated region
      $region67: #{_focal_loss_forward_impl.1} parent=5 // pred_check
        _
      $region68: #{_focal_loss_forward_impl.1} parent=5 // pred_check_branch
        %261 = sbr.rel (%p258) target = $region70
      $region69: #{_focal_loss_forward_impl.1} parent=5 // pred_region
        %s262 = ssub.s32 %s10, 1
        %s263 = sand.u32 %s93, 1
        %s264 = sand.u32 %s93, 1
        %s265 = smul.addr %s264, 24
        %s266 = scalar_lea.vmem [#allocation3], %s265
        // Predicated region
        $region71: #{_focal_loss_forward_impl.1} parent=69 // pred_check
          %p267 = pneg %p106
        $region72: #{_focal_loss_forward_impl.1} parent=69 // pred_check_branch
          %269 = sbr.rel (%p267) target = $region74
        $region73: #{_focal_loss_forward_impl.1} parent=69 // pred_region
          _
        $region74: #{_focal_loss_forward_impl.1} parent=69 // pred_fallthru
          _
        %s270 = sadd.s32 %s19, %s20
        %p271 = scmp.lt.s32.totalorder %s270, 1
        %s272 = scalar_select %p271, %s270, 1
        %s273 = smul.addr %s272, 4
        %s274 = scalar_lea.vmem %s0, %s273
        %p275 = pneg %p50
        %p276 = pneg %p47
        %s277 = sadd.s32 %s19, %s20
        %p278 = scmp.lt.s32.totalorder %s277, 1
        %s279 = scalar_select %p278, %s277, 1
        %s280 = smul.addr %s279, 4
        %s281 = scalar_lea.vmem %s1, %s280
        %p282 = pneg %p78
        %p283 = pneg %p75
        %s284 = sand.u32 %s93, 1
        %s285 = sand.u32 %s93, 1
        %s286 = smul.addr %s285, 24
        %s287 = scalar_lea.vmem [#allocation3], %s286
        %p288 = pneg %p106
        %p289 = pneg %p103
        %s290 = sadd.s32 %s19, %s20
        %p291 = scmp.lt.s32.totalorder %s290, 1
        %s292 = scalar_select %p291, %s290, 1
        %s293 = scalar_lea.vmem %s3, %s292
        %p294 = pneg %p134
        %p295 = pneg %p131
        %p296 = pneg %p160
        %p297 = pneg %p157
        %p298 = scmp.lt.s32.totalorder %s19, 1
        %s299 = scalar_select %p298, %s19, 1
        %s300 = smul.addr %s299, 8
        %s301 = scalar_lea.vmem %s4, %s300
        %s302 = sadd.s32 %s19, %s20
        %p303 = scmp.lt.s32.totalorder %s302, 1
        %s304 = scalar_select %p303, %s302, 1
        %s305 = smul.addr %s304, 4
        %s306 = scalar_lea.vmem %s0, %s305
        %s307 = sadd.s32 %s19, %s20
        %s308 = sadd.s32 %s19, %s20
        %p309 = scmp.lt.s32.totalorder %s308, 1
        %s310 = scalar_select %p309, %s308, 1
        %s311 = smul.addr %s310, 4
        %s312 = scalar_lea.vmem %s1, %s311
        %s313 = sadd.s32 %s19, %s20
        %s314 = sadd.s32 %s19, %s20
        %s315 = sadd.s32 %s19, %s20
        %p316 = scmp.lt.s32.totalorder %s315, 1
        %s317 = scalar_select %p316, %s315, 1
        %s318 = scalar_lea.vmem %s3, %s317
        %s319 = sadd.s32 %s19, %s20
        %p320 = scmp.lt.s32.totalorder %s19, 1
        %s321 = scalar_select %p320, %s19, 1
        %s322 = smul.addr %s321, 8
        %s323 = scalar_lea.vmem %s4, %s322
        %p324 = scmp.eq.s32.totalorder %s20, 0
        // Predicated region
        $region75: #{_focal_loss_forward_impl.1} parent=69 // pred_check
          %p325 = pneg %p324
        $region76: #{_focal_loss_forward_impl.1} parent=69 // pred_check_branch
          %327 = sbr.rel (%p325) target = $region78
        $region77: #{_focal_loss_forward_impl.1} parent=69 // pred_region
          %328 = vst [vmem:[#allocation2] sm:$0xff] 0.0
          %329 = vst [vmem:[%s323] sm:$0xff] 0.0
        $region78: #{_focal_loss_forward_impl.1} parent=69 // pred_fallthru
          _
        %v330 = vld [vmem:[%s318] sm:$0x1]
        %vm331 = vcmp.gt.s32.totalorder %v330, 0
        %v332 = vsel %vm331, 1, 0
        %v333 = vcvt.s32.f32 %v332
        %vm334 = vcmp.eq.s32.totalorder %v330, 0
        %v335 = vsel %vm334, 1, 0
        %v336 = vcvt.s32.f32 %v335
        %v337 = vld [vmem:[%s306] sm:$0xf]
        %v338 = vld [vmem:[%s312] sm:$0xf]
        %v339 = vsub.f32 %v337, %v338
        %v340 = vand.u32 2147483647, %v339
        %vm341 = vcmp.lt.f32.partialorder %v340, 1.0
        %v342 = vmul.f32 %v339, 0.5
        %v343 = vmul.f32 %v342, %v339
        %v344 = vsub.f32 %v340, 0.5
        %v345 = vsel %vm341, %v343, %v344
        %vm346 = vcmask 1043456
        %v347 = vsel %vm346, %v345, 0.0
        %v348 = vrot.slane %v347, 4
        %v349 = vadd.f32 %v347, %v348
        %v350 = vrot.slane %v349, 2
        %v351 = vadd.f32 %v349, %v350
        %v352 = vrot.slane %v351, 1
        %v353 = vadd.f32 %v351, %v352
        %v354 = vmul.f32 %v353, %v333
        %v355 = vld [vmem:[%s266] sm:$0xff]
        %v356 = vld [vmem:[%s266 + $0x8] sm:$0xff]
        %v357 = vld [vmem:[%s266 + $0x10] sm:$0x1f]
        %vm358 = vcmask 1044480
        %v359 = vsel %vm358, %v357, -inf
        %v360 = vmax.f32 %v355, %v356
        %v361 = vmax.f32 %v360, %v359
        %v362 = vrot.slane %v361, 4
        %v363 = vmax.f32 %v361, %v362
        %v364 = vrot.slane %v363, 2
        %v365 = vmax.f32 %v363, %v364
        %v366 = vrot.slane %v365, 1
        %v367 = vmax.f32 %v365, %v366
        %v368 = vsub.f32 %v355, %v367
        %v369 = vsub.f32 %v356, %v367
        %v370 = vsub.f32 %v357, %v367
        %v371 = vmul.f32 %v368, 1.442695
        %v372 = vpow.pop %v371
        %v373 = vmul.f32 %v369, 1.442695
        %v374 = vpow.pop %v373
        %v375 = vmul.f32 %v370, 1.442695
        %v376 = vpow.pop %v375
        %v377 = vadd.f32 %v372, %v374
        %v378 = vsel %vm358, %v376, 0.0
        %v379 = vadd.f32 %v377, %v378
        %v380 = vrot.slane %v379, 4
        %v381 = vadd.f32 %v379, %v380
        %v382 = vrot.slane %v381, 2
        %v383 = vadd.f32 %v381, %v382
        %v384 = vrot.slane %v383, 1
        %v385 = vadd.f32 %v383, %v384
        %v386 = vlog2.pop %v385
        %v387 = vmul.f32 %v386, 0.6931472
        %v388 = vlaneseq
        %v389 = vshrl.u32 %v388, 7
        %v390 = vadd.s32 %v389, 8
        %v391 = vadd.s32 %v389, 16
        %vm392 = vcmp.gt.s32.totalorder %v330, 0
        %v393 = vsel %vm392, %v330, 0
        %v394 = vperm.slane %v393, 0
        %vm395 = vcmp.eq.s32.totalorder %v389, %v394
        %vm396 = vcmp.eq.s32.totalorder %v390, %v394
        %vm397 = vcmp.eq.s32.totalorder %v391, %v394
        %v398 = vsel %vm395, 1, 0
        %v399 = vsel %vm396, 1, 0
        %v400 = vsel %vm397, 1, 0
        %v401 = vcvt.s32.f32 %v398
        %v402 = vcvt.s32.f32 %v399
        %v403 = vcvt.s32.f32 %v400
        %v404 = vmul.f32 %v401, %v368
        %v405 = vmul.f32 %v402, %v369
        %v406 = vmul.f32 %v403, %v370
        %v407 = vadd.f32 %v404, %v405
        %v408 = vsel %vm358, %v406, 0.0
        %v409 = vadd.f32 %v407, %v408
        %v410 = vrot.slane %v409, 4
        %v411 = vadd.f32 %v409, %v410
        %v412 = vrot.slane %v411, 2
        %v413 = vadd.f32 %v411, %v412
        %v414 = vrot.slane %v413, 1
        %v415 = vadd.f32 %v413, %v414
        %v416 = vsub.f32 %v415, %v387
        %v417 = vmul.f32 %v416, 1.442695
        %v418 = vpow.pop %v417
        %v419 = vsub.f32 1.0, %v418
        %v420 = vmul.f32 %v333, 0.75
        %v421 = vmul.f32 %v336, 0.25
        %v422 = vadd.f32 %v420, %v421
        %v423 = vmul.f32 %v419, %v419
        %v424 = vmul.f32 %v422, %v423
        %v425 = vsub.f32 0.0, %v424
        %v426 = vmul.f32 %v425, %v416
        %v427 = vld [vmem:[#allocation2] sm:$0x7]
        %v429 = vperm.slane %v426, 0
        %v432 = vperm.slane %v333, 0
        %vm434 = vcmask 1040384
        %v435 = vsel %vm434, %v354, %v429
        %vm436 = vcmask 1041408
        %v437 = vsel %vm436, %v435, %v432
        %v438 = vadd.f32 %v427, %v437
        %439 = vst [vmem:[#allocation2] sm:$0x7] %v438
        // Predicated region
        $region79: #{_focal_loss_forward_impl.1} parent=69 // pred_check
          %p440 = pneg %p324
        $region80: #{_focal_loss_forward_impl.1} parent=69 // pred_check_branch
          %442 = sbr.rel (%p440) target = $region82
        $region81: #{_focal_loss_forward_impl.1} parent=69 // pred_region
          %v443 = vld [vmem:[#allocation2] sm:$0x1]
          %v444 = vsel %vm434, %v443, 0.0
          %445 = vadd.xlane.f32.xlu0 %v444
          %v446 = vpop.xlane.xlu0 %445
          %v447 = vrot.slane %v446, 4
          %v448 = vadd.f32 %v446, %v447
          %v449 = vrot.slane %v448, 2
          %v450 = vadd.f32 %v448, %v449
          %v451 = vrot.slane %v450, 1
          %v452 = vadd.f32 %v450, %v451
          %s453 = vtos %v452
          %v454 = vld [vmem:[#allocation2 + $0x1] sm:$0x1]
          %v455 = vsel %vm434, %v454, 0.0
          %456 = vadd.xlane.f32.xlu0 %v455
          %v457 = vpop.xlane.xlu0 %456
          %v458 = vrot.slane %v457, 4
          %v459 = vadd.f32 %v457, %v458
          %v460 = vrot.slane %v459, 2
          %v461 = vadd.f32 %v459, %v460
          %v462 = vrot.slane %v461, 1
          %v463 = vadd.f32 %v461, %v462
          %s464 = vtos %v463
          %v465 = vld [vmem:[#allocation2 + $0x2] sm:$0x1]
          %v466 = vsel %vm434, %v465, 0.0
          %467 = vadd.xlane.f32.xlu0 %v466
          %v468 = vpop.xlane.xlu0 %467
          %v469 = vrot.slane %v468, 4
          %v470 = vadd.f32 %v468, %v469
          %v471 = vrot.slane %v470, 2
          %v472 = vadd.f32 %v470, %v471
          %v473 = vrot.slane %v472, 1
          %v474 = vadd.f32 %v472, %v473
          %s475 = vtos %v474
          %vm476 = vcmp.eq.s32.totalorder %v389, 0
          %vm477 = vcmp.eq.s32.totalorder %v389, 1
          %vm478 = vcmp.eq.s32.totalorder %v389, 2
          %v479 = vstv %s475
          %v480 = vsel %vm478, %v479, 0.0
          %v481 = vstv %s464
          %v482 = vsel %vm477, %v481, %v480
          %v483 = vstv %s453
          %v484 = vsel %vm476, %v483, %v482
          %485 = vst [vmem:[%s323] sm:$0xff] %v484
        $region82: #{_focal_loss_forward_impl.1} parent=69 // pred_fallthru
          _
        %p486 = scmp.lt.s32.totalorder %s19, 1
        %s487 = scalar_select %p486, %s19, 1
        %s488 = smul.addr %s487, 8
        %s489 = scalar_lea.vmem %s4, %s488
        // Predicated region
        $region83: #{_focal_loss_forward_impl.1} parent=69 // pred_check
          %p490 = pneg %p157
        $region84: #{_focal_loss_forward_impl.1} parent=69 // pred_check_branch
          %492 = sbr.rel (%p490) target = $region86
        $region85: #{_focal_loss_forward_impl.1} parent=69 // pred_region
          _
        $region86: #{_focal_loss_forward_impl.1} parent=69 // pred_fallthru
          _
      $region70: #{_focal_loss_forward_impl.1} parent=5 // pred_fallthru
        _
      %p493 = scmp.le.s32.totalorder 2, %s10
      // Predicated region
      $region87: #{_focal_loss_forward_impl.1} parent=5 // pred_check
        %p494 = pneg %p493
      $region88: #{_focal_loss_forward_impl.1} parent=5 // pred_check_branch
        %496 = sbr.rel (%p494) target = $region90
      $region89: #{_focal_loss_forward_impl.1} parent=5 // pred_region
        %s497 = ssub.s32 %s10, 2
        // Predicated region
        $region91: #{_focal_loss_forward_impl.1} parent=89 // pred_check
          %p498 = pneg %p163
        $region92: #{_focal_loss_forward_impl.1} parent=89 // pred_check_branch
          %500 = sbr.rel (%p498) target = $region94
        $region93: #{_focal_loss_forward_impl.1} parent=89 // pred_region
          %p501 = scmp.lt.s32.totalorder %s21, 1
          %s502 = scalar_select %p501, %s21, 1
          %s503 = smul.addr %s502, 8
          %s504 = scalar_lea.vmem %s4, %s503
        $region94: #{_focal_loss_forward_impl.1} parent=89 // pred_fallthru
          _
      $region90: #{_focal_loss_forward_impl.1} parent=5 // pred_fallthru
        _
    $region6: #{_focal_loss_forward_impl.1} parent=1 // loop_footer
      %s14 = sadd.s32 1, %s10
    $region7: #{_focal_loss_forward_impl.1} parent=1 // loop_footer_branch
      %9 = sbr.rel target = $region3
    $region8: #{_focal_loss_forward_impl.1} parent=1 // loop_exit
      _

</llo_original>
